<compile_context>
chip_gen: v5e
topology: v5e:2x2
jax: 0.10.0
libtpu: 0.0.40
codegen_flags: <defaults>
</compile_context>

<pallas_src>
import functools
import math

import jax
import jax.numpy as jnp
from jax import lax
from jax.experimental import pallas as pl
from jax.experimental.pallas import tpu as pltpu


_MASK_VALUE = -1e30  # large finite negative: -inf-safe for fully masked rows


def _round_up(x, m):
    return ((x + m - 1) // m) * m


def _lane_tile(x, reps):
    """Tile a lane-replicated (rows, 128) array to (rows, 128*reps)."""
    return x if reps == 1 else jnp.tile(x, (1, reps))


def _vmem_limit(bytes_needed):
    # Generous headroom over the block-buffer estimate, clamped under v7x's
    # 64 MiB physical VMEM (and above v5e's 16 MiB scoped default).
    return int(min(max(4 * bytes_needed, 16 * 1024 * 1024), 48 * 1024 * 1024))


# --------------------------------------------------------------------------
# Kernel 1: fused QKV projection, d_in-tiled, f32 accumulator.
#   x_ref:   (proj_rows, k_block)
#   w_ref:   (k_block, 3*d_out_p)   [1/sqrt(d_out) folded into the Wq columns]
#   qkv_ref: (proj_rows, 3*d_out_p)
# --------------------------------------------------------------------------
def _qkv_proj_kernel(x_ref, w_ref, qkv_ref, acc_ref):
    kk = pl.program_id(1)

    @pl.when(kk == 0)
    def _init():
        acc_ref[...] = jnp.zeros_like(acc_ref)

    acc_ref[...] += jnp.dot(x_ref[...], w_ref[...],
                            preferred_element_type=jnp.float32)

    @pl.when(kk == pl.num_programs(1) - 1)
    def _finalize():
        qkv_ref[...] = acc_ref[...].astype(qkv_ref.dtype)


# --------------------------------------------------------------------------
# Kernel 2: flash-attention style causal attention with online softmax.
# --------------------------------------------------------------------------
def _flash_attn_kernel(q_ref, k_ref, v_ref, o_ref, m_sc, l_sc, acc_sc,
                       *, n_q, block_q, block_kv, d_out_p):
    i = pl.program_id(0)          # flattened (batch, q-block) index
    ki = pl.program_id(1)         # kv block (innermost, "arbitrary")
    qi = i % n_q
    q_start = qi * block_q
    kv_start = ki * block_kv

    kv_reps = block_kv // 128
    o_reps = d_out_p // 128

    @pl.when(ki == 0)
    def _init():
        m_sc[...] = jnp.full_like(m_sc, _MASK_VALUE)
        l_sc[...] = jnp.zeros_like(l_sc)
        acc_sc[...] = jnp.zeros_like(acc_sc)

    def _update(apply_mask):
        q = q_ref[...]            # (block_q, d_out_p), scale folded into weights
        k = k_ref[...]            # (block_kv, d_out_p)
        # contract the last dims of both operands -> no explicit k.T relayout
        s = lax.dot_general(q, k, (((1,), (1,)), ((), ())),
                            preferred_element_type=jnp.float32)  # (bq, bkv) f32
        if apply_mask:
            # one iota-difference tile vs a scalar (cheaper than 2 iota+add+cmp)
            diff = (lax.broadcasted_iota(jnp.int32, s.shape, 1)
                    - lax.broadcasted_iota(jnp.int32, s.shape, 0))
            s = jnp.where(diff > (q_start - kv_start), _MASK_VALUE, s)

        m_prev = m_sc[...]                                    # (bq,128) lane-repl
        m_new = jnp.maximum(m_prev, jnp.max(s, axis=-1, keepdims=True))
        alpha = jnp.exp(m_prev - m_new)                       # (bq,128)
        p = jnp.exp(s - _lane_tile(m_new, kv_reps))           # (bq, bkv) f32
        l_sc[...] = alpha * l_sc[...] + jnp.sum(p, axis=-1, keepdims=True)
        acc_sc[...] = (_lane_tile(alpha, o_reps) * acc_sc[...]
                       + jnp.dot(p.astype(v_ref.dtype), v_ref[...],
                                 preferred_element_type=jnp.float32))
        m_sc[...] = m_new

    # Tile entirely below the diagonal: no mask needed.
    @pl.when(kv_start + block_kv - 1 <= q_start)
    def _unmasked_tile():
        _update(apply_mask=False)

    # Tile straddling the diagonal: build the mask only here.
    @pl.when(jnp.logical_and(kv_start + block_kv - 1 > q_start,
                             kv_start <= q_start + block_q - 1))
    def _diag_tile():
        _update(apply_mask=True)

    # Fully-masked tiles (kv_start > q_start + block_q - 1): compute skipped,
    # and (via the clamped K/V index maps) their K/V blocks are never DMA'd.

    @pl.when(ki == pl.num_programs(1) - 1)
    def _finalize():
        l = l_sc[...]
        inv = pl.reciprocal(l, approx=True)       # EUP slot
        inv = inv * (2.0 - l * inv)               # one Newton step -> ~f32 acc.
        o_ref[...] = (acc_sc[...] * _lane_tile(inv, o_reps)).astype(o_ref.dtype)


# --------------------------------------------------------------------------
# Wrapper
# --------------------------------------------------------------------------
def causal_attention(x, w_query, w_key, w_value, *, block_q=256, block_kv=256,
                     qkv_dtype=None):
    """x: (B, S, d_in); w_*: (d_out, d_in) in PyTorch nn.Linear convention.

    qkv_dtype: storage dtype of the q/k/v activations (and matmul operands).
    Pass jnp.bfloat16 for the bf16-native MXU path; accumulation and the
    softmax state stay f32. Defaults to x.dtype.
    """
    B, S, d_in = x.shape
    d_out = w_query.shape[0]
    out_dtype = x.dtype
    if qkv_dtype is None:
        qkv_dtype = x.dtype
    scale = 1.0 / float(d_out) ** 0.5

    # lane-dense / MXU-friendly padded sizes
    d_in_p = _round_up(d_in, 128)
    d_out_p = _round_up(d_out, 128)
    # don't over-pad tiny sequences; keep tiles multiples of 128
    block_q = min(block_q, _round_up(S, 128))
    block_kv = min(block_kv, _round_up(S, 128))
    assert block_q % 128 == 0 and block_kv % 128 == 0
    s_p = _round_up(S, math.lcm(block_q, block_kv))
    n_q = s_p // block_q
    n_kv = s_p // block_kv

    # fused (d_in_p, 3*d_out_p) weight [Wq^T*scale | Wk^T | Wv^T], zero-padded.
    # Note: weights are stored in qkv_dtype (bf16 path downcasts them here).
    w_qkv = jnp.zeros((d_in_p, 3 * d_out_p), dtype=qkv_dtype)
    w_qkv = w_qkv.at[:d_in, 0:d_out].set(
        (jnp.asarray(w_query, jnp.float32).T * scale).astype(qkv_dtype))
    w_qkv = w_qkv.at[:d_in, d_out_p:d_out_p + d_out].set(
        jnp.asarray(w_key, qkv_dtype).T)
    w_qkv = w_qkv.at[:d_in, 2 * d_out_p:2 * d_out_p + d_out].set(
        jnp.asarray(w_value, qkv_dtype).T)

    # zero-pad activations: padded keys are excluded by the causal mask,
    # padded feature dims contribute zeros, padded query rows are sliced off.
    x_p = jnp.pad(x, ((0, 0), (0, s_p - S), (0, d_in_p - d_in))).astype(qkv_dtype)
    rows = B * s_p
    x_flat = x_p.reshape(rows, d_in_p)        # free reshape (merge leading dims)

    # ---- kernel 1: fused QKV projection (row-flattened, d_in-tiled) ----
    proj_rows = block_q                       # divides rows (s_p % block_q == 0)
    if d_in_p % 512 == 0:
        k_block = 512
    elif d_in_p % 256 == 0:
        k_block = 256
    else:
        k_block = 128
    n_k = d_in_p // k_block

    itemsize = jnp.dtype(qkv_dtype).itemsize
    proj_vmem = (2 * (proj_rows * k_block + k_block * 3 * d_out_p) * itemsize
                 + 2 * proj_rows * 3 * d_out_p * itemsize
                 + proj_rows * 3 * d_out_p * 4)

    qkv_flat = pl.pallas_call(
        _qkv_proj_kernel,
        out_shape=jax.ShapeDtypeStruct((rows, 3 * d_out_p), qkv_dtype),
        grid_spec=pltpu.PrefetchScalarGridSpec(
            num_scalar_prefetch=0,
            grid=(rows // proj_rows, n_k),
            in_specs=[
                pl.BlockSpec((proj_rows, k_block), lambda i, kk: (i, kk)),
                pl.BlockSpec((k_block, 3 * d_out_p), lambda i, kk: (kk, 0)),
            ],
            out_specs=pl.BlockSpec((proj_rows, 3 * d_out_p),
                                   lambda i, kk: (i, 0)),
            scratch_shapes=[pltpu.VMEM((proj_rows, 3 * d_out_p), jnp.float32)],
        ),
        compiler_params=pltpu.CompilerParams(
            dimension_semantics=("parallel", "arbitrary"),
            vmem_limit_bytes=_vmem_limit(proj_vmem)),
    )(x_flat, w_qkv)

    qkv = qkv_flat.reshape(B, s_p, 3 * d_out_p)   # free reshape

    # ---- kernel 2: flash causal attention ----
    # q/k/v planes are selected via the last-dim block index (0 / 1 / 2).
    def _q_index(i, ki):
        return (i // n_q, i % n_q, 0)

    def _k_index(i, ki):
        qi = i % n_q
        last_kv = ((qi + 1) * block_q - 1) // block_kv
        return (i // n_q, jnp.minimum(ki, last_kv), 1)   # clamp: no DMA for
                                                         # fully-masked tiles
    def _v_index(i, ki):
        qi = i % n_q
        last_kv = ((qi + 1) * block_q - 1) // block_kv
        return (i // n_q, jnp.minimum(ki, last_kv), 2)

    def _o_index(i, ki):
        return (i // n_q, i % n_q, 0)

    attn_vmem = (2 * (block_q + 2 * block_kv) * d_out_p * itemsize     # q,k,v in
                 + 2 * block_q * d_out_p * jnp.dtype(out_dtype).itemsize  # out
                 + (2 * block_q * 128 + block_q * d_out_p) * 4            # m,l,acc
                 + block_q * block_kv * 4)                                # score

    out_p = pl.pallas_call(
        functools.partial(_flash_attn_kernel, n_q=n_q, block_q=block_q,
                          block_kv=block_kv, d_out_p=d_out_p),
        out_shape=jax.ShapeDtypeStruct((B, s_p, d_out_p), out_dtype),
        grid_spec=pltpu.PrefetchScalarGridSpec(
            num_scalar_prefetch=0,
            grid=(B * n_q, n_kv),       # large parallel axis leads (v7x 2 TCs)
            in_specs=[
                pl.BlockSpec((pl.Squeezed(), block_q, d_out_p), _q_index),
                pl.BlockSpec((pl.Squeezed(), block_kv, d_out_p), _k_index),
                pl.BlockSpec((pl.Squeezed(), block_kv, d_out_p), _v_index),
            ],
            out_specs=pl.BlockSpec((pl.Squeezed(), block_q, d_out_p), _o_index),
            scratch_shapes=[
                pltpu.VMEM((block_q, 128), jnp.float32),     # m, lane-replicated
                pltpu.VMEM((block_q, 128), jnp.float32),     # l, lane-replicated
                pltpu.VMEM((block_q, d_out_p), jnp.float32),  # f32 accumulator
            ],
        ),
        compiler_params=pltpu.CompilerParams(
            dimension_semantics=("parallel", "arbitrary"),
            vmem_limit_bytes=_vmem_limit(attn_vmem)),
    )(qkv, qkv, qkv)

    return out_p[:, :S, :d_out].astype(out_dtype)


# --------------------------------------------------------------------------
# Pure-JAX reference (eval-mode PyTorch forward)
# --------------------------------------------------------------------------
def causal_attention_ref(x, w_query, w_key, w_value):
    q = x @ w_query.T
    k = x @ w_key.T
    v = x @ w_value.T
    scores = jnp.einsum("bqd,bkd->bqk", q, k)
    s = x.shape[1]
    mask = jnp.triu(jnp.ones((s, s), dtype=bool), k=1)
    scores = jnp.where(mask[None], -jnp.inf, scores)
    w = jax.nn.softmax(scores / (k.shape[-1] ** 0.5), axis=-1)
    return w @ v


if __name__ == "__main__":
    # Shapes matching the module spec: batch=2, seq(context_length)=6, d_in=3, d_out=2.
    B, S, D_IN, D_OUT = 2, 6, 3, 2

    key = jax.random.PRNGKey(0)
    kx, kq, kk, kv = jax.random.split(key, 4)

    x = jax.random.normal(kx, (B, S, D_IN), dtype=jnp.float32)
    # nn.Linear(d_in, d_out, bias=False) weights have shape (d_out, d_in)
    bound = 1.0 / (D_IN ** 0.5)
    w_query = jax.random.uniform(kq, (D_OUT, D_IN), jnp.float32, -bound, bound)
    w_key = jax.random.uniform(kk, (D_OUT, D_IN), jnp.float32, -bound, bound)
    w_value = jax.random.uniform(kv, (D_OUT, D_IN), jnp.float32, -bound, bound)

    ref = causal_attention_ref(x, w_query, w_key, w_value)

    # f32 path (matches the PyTorch module's default dtype): tight tolerance.
    out = jax.block_until_ready(causal_attention(x, w_query, w_key, w_value))
    assert out.shape == (B, S, D_OUT)
    assert jnp.allclose(out, ref, atol=1e-4, rtol=1e-4), "f32 mismatch vs reference"

    # bf16 storage / bf16 MXU path with f32 accumulation: looser tolerance.
    out_bf16 = jax.block_until_ready(
        causal_attention(x, w_query, w_key, w_value, qkv_dtype=jnp.bfloat16))
    assert out_bf16.shape == (B, S, D_OUT)
    assert jnp.allclose(out_bf16, ref, atol=3e-2, rtol=3e-2), "bf16 mismatch vs reference"

    print("KERNEL_OK")
</pallas_src>

<mosaic_0001>
module attributes {stable_mosaic.version = 11 : i64} {
  func.func @_qkv_proj_kernel(%arg0: i32, %arg1: i32, %arg2: memref<128x128xf32, #tpu.memory_space<vmem>>, %arg3: memref<128x384xf32, #tpu.memory_space<vmem>>, %arg4: memref<128x384xf32, #tpu.memory_space<vmem>>, %arg5: memref<128x384xf32, #tpu.memory_space<vmem>>) attributes {dimension_semantics = [#tpu.dimension_semantics<parallel>, #tpu.dimension_semantics<arbitrary>], iteration_bounds = array<i64: 2, 1>, scalar_prefetch = 0 : i64, scratch_operands = 1 : i64, tpu.core_type = #tpu.core_type<tc>, window_params = [{transform_indices = @transform_0, window_bounds = array<i64: 128, 128>}, {transform_indices = @transform_1, window_bounds = array<i64: 128, 384>}, {transform_indices = @transform_2, window_bounds = array<i64: 128, 384>}]} {
    %c0_i32 = arith.constant 0 : i32
    %0 = arith.cmpi eq, %arg1, %c0_i32 : i32
    %1 = arith.extui %0 : i1 to i32
    %c0_i32_0 = arith.constant 0 : i32
    %2 = arith.cmpi ne, %1, %c0_i32_0 : i32
    scf.if %2 {
      %cst_10 = arith.constant 0.000000e+00 : f32
      %12 = vector.broadcast %cst_10 : f32 to vector<128x384xf32>
      %c0_11 = arith.constant 0 : index
      %c0_12 = arith.constant 0 : index
      %13 = vector.load %arg5[%c0_11, %c0_12] : memref<128x384xf32, #tpu.memory_space<vmem>>, vector<128x384xf32>
      tpu.vector_store %arg5[%c0_11, %c0_12], %12 {strides = array<i32>} : memref<128x384xf32, #tpu.memory_space<vmem>>, vector<128x384xf32>,
    } else {
    }
    %c0 = arith.constant 0 : index
    %c0_1 = arith.constant 0 : index
    %3 = vector.load %arg5[%c0, %c0_1] : memref<128x384xf32, #tpu.memory_space<vmem>>, vector<128x384xf32>
    %c0_2 = arith.constant 0 : index
    %c0_3 = arith.constant 0 : index
    %4 = vector.load %arg2[%c0_2, %c0_3] : memref<128x128xf32, #tpu.memory_space<vmem>>, vector<128x128xf32>
    %c0_4 = arith.constant 0 : index
    %c0_5 = arith.constant 0 : index
    %5 = vector.load %arg3[%c0_4, %c0_5] : memref<128x384xf32, #tpu.memory_space<vmem>>, vector<128x384xf32>
    %cst = arith.constant dense<0.000000e+00> : vector<128x384xf32>
    %6 = tpu.matmul %4, %5, %cst {dimension_numbers = #tpu.dot_dimension_numbers<[1], [0], [0], [1], [0, 0, 1, 1], [], []>} : vector<128x128xf32>, vector<128x384xf32>, vector<128x384xf32> -> vector<128x384xf32>
    %7 = arith.addf %3, %6 : vector<128x384xf32>
    %c0_6 = arith.constant 0 : index
    %c0_7 = arith.constant 0 : index
    %8 = vector.load %arg5[%c0_6, %c0_7] : memref<128x384xf32, #tpu.memory_space<vmem>>, vector<128x384xf32>
    tpu.vector_store %arg5[%c0_6, %c0_7], %7 {strides = array<i32>} : memref<128x384xf32, #tpu.memory_space<vmem>>, vector<128x384xf32>,
    %c0_i32_8 = arith.constant 0 : i32
    %9 = arith.cmpi eq, %arg1, %c0_i32_8 : i32
    %10 = arith.extui %9 : i1 to i32
    %c0_i32_9 = arith.constant 0 : i32
    %11 = arith.cmpi ne, %10, %c0_i32_9 : i32
    scf.if %11 {
      %c0_10 = arith.constant 0 : index
      %c0_11 = arith.constant 0 : index
      %12 = vector.load %arg5[%c0_10, %c0_11] : memref<128x384xf32, #tpu.memory_space<vmem>>, vector<128x384xf32>
      %c0_12 = arith.constant 0 : index
      %c0_13 = arith.constant 0 : index
      %13 = vector.load %arg4[%c0_12, %c0_13] : memref<128x384xf32, #tpu.memory_space<vmem>>, vector<128x384xf32>
      tpu.vector_store %arg4[%c0_12, %c0_13], %12 {strides = array<i32>} : memref<128x384xf32, #tpu.memory_space<vmem>>, vector<128x384xf32>,
    } else {
    }
    return
  }
  func.func @transform_0(%arg0: i32, %arg1: i32) -> (i32, i32) {
    %c0_i32 = arith.constant 0 : i32
    return %arg0, %arg1 : i32, i32
  }
  func.func @transform_1(%arg0: i32, %arg1: i32) -> (i32, i32) {
    %c0_i32 = arith.constant 0 : i32
    %c0_i32_0 = arith.constant 0 : i32
    return %arg1, %c0_i32 : i32, i32
  }
  func.func @transform_2(%arg0: i32, %arg1: i32) -> (i32, i32) {
    %c0_i32 = arith.constant 0 : i32
    %c0_i32_0 = arith.constant 0 : i32
    return %arg0, %c0_i32 : i32, i32
  }
}

</mosaic_0001>

<llo_original>
// kernel: tpu_custom_call.1
$region0: #{tpu_custom_call.1}
  #allocation0 [shape = 'u32[]', space=smem, size = 0x4, offset = 0x4, fixed_abs, tag = 'smem constant byte address 0x4 - core index']
  #allocation1 [shape = 'u32[72,128]{1,0:T(1,128)}', space=vmem, size = 0x9000, scoped, tag = 'internal scratch']
  #allocation2 [shape = 'f32[128,384]{1,0:T(8,128)}', space=vmem, size = 0x30000, scoped, tag = 'scratch operand']
  %s0 = inlined_call_operand.hbm [shape: f32[256,128], index: 0, kind: input, shape index: {}]
  %s1 = inlined_call_operand.hbm [shape: f32[128,384], index: 1, kind: input, shape index: {}]
  %s2 = inlined_call_operand.hbm [shape: f32[256,384], index: 2, kind: output, shape index: {}]
  %s3 = sld [smem:[#allocation0]]
  $region57: #{tpu_custom_call.1} parent=0
    _
  %s5 = ssub.s32 1, %s3
  %s6 = scalar_select 0, %s5, %s3
  $region1: #{tpu_custom_call.1} parent=0
    #allocation3 [shape = 'u8[131072]{0}', space=vmem, size = 0x20000, scoped, tag = 'input window, operand 0']
    #allocation4 [shape = 's32[2]{0}', space=sflag, size = 0x8, scoped, tag = 'scoped memory for tpu_custom_call.1']
    #allocation5 [shape = 's32[2]{0}', space=sflag, size = 0x8, scoped, tag = 'scoped memory for tpu_custom_call.1']
    #allocation6 [shape = 'u8[196608]{0}', space=vmem, size = 0x30000, scoped, tag = 'input window, operand 1, single buffered']
    #allocation7 [shape = 's32[1]{0}', space=sflag, size = 0x4, scoped, tag = 'scoped memory for tpu_custom_call.1']
    #allocation8 [shape = 'u8[393216]{0}', space=vmem, size = 0x60000, scoped, tag = 'output window, operand 0']
    %7 = vsyncpa [#allocation4], 0
    %s8 = scalar_lea.sflag [#allocation4], 1
    %9 = vsyncpa %s8, 0
    %10 = vsyncpa [#allocation7], 0
    %11 = vsyncpa [#allocation5], 0
    %s12 = scalar_lea.sflag [#allocation5], 1
    %13 = vsyncpa %s12, 0
    loop: start=0, step=1, limit=4
    $region2: #{tpu_custom_call.1} parent=1 // loop_pre_header
      _
    $region3: #{tpu_custom_call.1} parent=1 // loop_header
      %s15 = sphi 0, %s19
      %p16 = scmp.ge.s32.totalorder %s15, 4
      %s22 = sphi 0, %s34
      %s23 = sphi 0, %s30
      %s24 = sphi 0, %s22
      %s25 = sphi 0, %s23
      %s26 = sphi 0, %s24
      %s27 = sphi 0, %s25
      %s39 = sphi 0, %s41
      %s42 = sphi 0, %s39
      %s43 = sphi 0, %s42
      %s59 = sphi 0, %s43
      %s65 = sphi 0, %s67
      %s68 = sphi 0, %s65
      %s69 = sphi 0, %s68
      %s85 = sphi 0, %s69
      %s91 = sphi 0, %s93
      %s94 = sphi 0, %s91
      %s95 = sphi 0, %s94
      %s111 = sphi 0, %s95
    $region4: #{tpu_custom_call.1} parent=1 // loop_header_branch
      %18 = sbr.rel (%p16) target = $region8
    $region5: #{tpu_custom_call.1} parent=1 // loop_body
      %s20 = ssub.s32 %s15, 1
      %s21 = ssub.s32 %s15, 2
      %s28 = sadd.s32 1, %s23
      %p29 = scmp.ge.s32.totalorder %s28, 1
      %s30 = scalar_select %p29, 0, %s28
      %s31 = sadd.s32 1, %s22
      %s32 = scalar_select %p29, %s31, %s22
      %p33 = scmp.ge.s32.totalorder %s32, 2
      %s34 = scalar_select %p33, 0, %s32
      %s35 = ssub.s32 %s22, %s34
      %s36 = ssub.s32 %s23, %s30
      %s37 = sor.u32 %s35, %s36
      %p38 = scmp.eq.s32.totalorder %s37, 0
      %s40 = sadd.s32 %s39, 1
      %s41 = scalar_select %p38, %s39, %s40
      %p44 = pneg %p38
      %p45 = scmp.eq.s32.totalorder %s15, 1
      %p46 = por %p44, %p45
      %p47 = scmp.ne.s32.totalorder %s39, %s42
      %p48 = scmp.eq.s32.totalorder %s15, 0
      %p49 = por %p47, %p48
      %p50 = scmp.ne.s32.totalorder %s39, %s42
      %p51 = scmp.eq.s32.totalorder %s20, 1
      %p52 = por %p50, %p51
      %p53 = scmp.ne.s32.totalorder %s42, %s43
      %p54 = scmp.eq.s32.totalorder %s20, 0
      %p55 = por %p53, %p54
      %p56 = scmp.ne.s32.totalorder %s42, %s43
      %p57 = scmp.eq.s32.totalorder %s21, 1
      %p58 = por %p56, %p57
      %p60 = scmp.ne.s32.totalorder %s43, %s59
      %p61 = scmp.eq.s32.totalorder %s21, 0
      %p62 = por %p60, %p61
      %s63 = ssub.s32 %s23, %s30
      %p64 = scmp.eq.s32.totalorder %s63, 0
      %s66 = sadd.s32 %s65, 1
      %s67 = scalar_select %p64, %s65, %s66
      %p70 = pneg %p64
      %p71 = scmp.eq.s32.totalorder %s15, 1
      %p72 = por %p70, %p71
      %p73 = scmp.ne.s32.totalorder %s65, %s68
      %p74 = scmp.eq.s32.totalorder %s15, 0
      %p75 = por %p73, %p74
      %p76 = scmp.ne.s32.totalorder %s65, %s68
      %p77 = scmp.eq.s32.totalorder %s20, 1
      %p78 = por %p76, %p77
      %p79 = scmp.ne.s32.totalorder %s68, %s69
      %p80 = scmp.eq.s32.totalorder %s20, 0
      %p81 = por %p79, %p80
      %p82 = scmp.ne.s32.totalorder %s68, %s69
      %p83 = scmp.eq.s32.totalorder %s21, 1
      %p84 = por %p82, %p83
      %p86 = scmp.ne.s32.totalorder %s69, %s85
      %p87 = scmp.eq.s32.totalorder %s21, 0
      %p88 = por %p86, %p87
      %s89 = ssub.s32 %s22, %s34
      %p90 = scmp.eq.s32.totalorder %s89, 0
      %s92 = sadd.s32 %s91, 1
      %s93 = scalar_select %p90, %s91, %s92
      %p96 = pneg %p90
      %p97 = scmp.eq.s32.totalorder %s15, 1
      %p98 = por %p96, %p97
      %p99 = scmp.ne.s32.totalorder %s91, %s94
      %p100 = scmp.eq.s32.totalorder %s15, 0
      %p101 = por %p99, %p100
      %p102 = scmp.ne.s32.totalorder %s91, %s94
      %p103 = scmp.eq.s32.totalorder %s20, 1
      %p104 = por %p102, %p103
      %p105 = scmp.ne.s32.totalorder %s94, %s95
      %p106 = scmp.eq.s32.totalorder %s20, 0
      %p107 = por %p105, %p106
      %p108 = scmp.ne.s32.totalorder %s94, %s95
      %p109 = scmp.eq.s32.totalorder %s21, 1
      %p110 = por %p108, %p109
      %p112 = scmp.ne.s32.totalorder %s95, %s111
      %p113 = scmp.eq.s32.totalorder %s21, 0
      %p114 = por %p112, %p113
      %p115 = scmp.le.s32.totalorder 1, %s15
      %p116 = scmp.lt.s32.totalorder %s15, 3
      %p117 = pnand %p115, %p116
      %p118 = pneg %p117
      // Predicated region
      $region9: #{tpu_custom_call.1} parent=5 // pred_check
        _
      $region10: #{tpu_custom_call.1} parent=5 // pred_check_branch
        %120 = sbr.rel (%p117) target = $region12
      $region11: #{tpu_custom_call.1} parent=5 // pred_region
        %s121 = ssub.s32 %s15, 1
        // Predicated region
        $region13: #{tpu_custom_call.1} parent=11 // pred_check
          %p122 = pneg %p81
        $region14: #{tpu_custom_call.1} parent=11 // pred_check_branch
          %124 = sbr.rel (%p122) target = $region16
        $region15: #{tpu_custom_call.1} parent=11 // pred_region
          %s125 = smul.u32 16, %s25
          %127 = vsyncadd [#allocation7], 0
          %s128 = smul.addr %s125, 3
          %s129 = smul.addr %s128, 8
          %s130 = scalar_lea.hbm %s1, %s129
          %s131 = sshll.u32 %s130, 4
          %s132 = int_to_ptr.hbm [resolvable:$true] %s131
          %s133 = sshll.u32 [#allocation6], 4
          %s134 = int_to_ptr.vmem [resolvable:$true] %s133
          %139 = dma.hbm_to_vmem [thread:$0]  %s132, 6144, %s134, [#allocation7], 384, 384, 24
        $region16: #{tpu_custom_call.1} parent=11 // pred_fallthru
          _
      $region12: #{tpu_custom_call.1} parent=5 // pred_fallthru
        _
      %p140 = scmp.lt.s32.totalorder %s15, 2
      // Predicated region
      $region17: #{tpu_custom_call.1} parent=5 // pred_check
        %p141 = pneg %p140
      $region18: #{tpu_custom_call.1} parent=5 // pred_check_branch
        %143 = sbr.rel (%p141) target = $region20
      $region19: #{tpu_custom_call.1} parent=5 // pred_region
        // Predicated region
        $region21: #{tpu_custom_call.1} parent=19 // pred_check
          %p144 = pneg %p49
        $region22: #{tpu_custom_call.1} parent=19 // pred_check_branch
          %146 = sbr.rel (%p144) target = $region24
        $region23: #{tpu_custom_call.1} parent=19 // pred_region
          %s147 = sand.u32 %s39, 1
          %s148 = scalar_lea.sflag [#allocation4], %s147
          %s149 = sand.u32 %s39, 1
          %s150 = smul.addr %s149, 128
          %s151 = scalar_lea.vmem [#allocation3], %s150
          %s152 = smul.u32 16, %s22
          %154 = vsyncadd %s148, 0
          %s155 = sadd.s32 %s23, %s152
          %s156 = smul.addr %s155, 8
          %s157 = scalar_lea.hbm %s0, %s156
          %s158 = sshll.u32 %s157, 4
          %s159 = int_to_ptr.hbm [resolvable:$true] %s158
          %s160 = sshll.u32 %s151, 4
          %s161 = int_to_ptr.vmem [resolvable:$true] %s160
          %166 = dma.hbm_to_vmem [thread:$0]  %s159, 2048, %s161, %s148, 128, 128, 8
        $region24: #{tpu_custom_call.1} parent=19 // pred_fallthru
          _
      $region20: #{tpu_custom_call.1} parent=5 // pred_fallthru
        _
      %p167 = scmp.le.s32.totalorder 1, %s15
      %p168 = scmp.lt.s32.totalorder %s15, 3
      %p169 = pnand %p167, %p168
      %p170 = pneg %p169
      // Predicated region
      $region25: #{tpu_custom_call.1} parent=5 // pred_check
        _
      $region26: #{tpu_custom_call.1} parent=5 // pred_check_branch
        %172 = sbr.rel (%p169) target = $region28
      $region27: #{tpu_custom_call.1} parent=5 // pred_region
        %s173 = ssub.s32 %s15, 1
        %s174 = sand.u32 %s42, 1
        %s175 = scalar_lea.sflag [#allocation4], %s174
        %s176 = sand.u32 %s42, 1
        %s177 = smul.addr %s176, 128
        %s178 = scalar_lea.vmem [#allocation3], %s177
        // Predicated region
        $region29: #{tpu_custom_call.1} parent=27 // pred_check
          %p179 = pneg %p55
        $region30: #{tpu_custom_call.1} parent=27 // pred_check_branch
          %181 = sbr.rel (%p179) target = $region32
        $region31: #{tpu_custom_call.1} parent=27 // pred_region
          %183 = dma.done %s175, 2048
        $region32: #{tpu_custom_call.1} parent=27 // pred_fallthru
          _
        // Predicated region
        $region33: #{tpu_custom_call.1} parent=27 // pred_check
          %p184 = pneg %p81
        $region34: #{tpu_custom_call.1} parent=27 // pred_check_branch
          %186 = sbr.rel (%p184) target = $region36
        $region35: #{tpu_custom_call.1} parent=27 // pred_region
          %188 = dma.done [#allocation7], 6144
        $region36: #{tpu_custom_call.1} parent=27 // pred_fallthru
          _
        %s189 = sand.u32 %s42, 1
        %s190 = scalar_lea.sflag [#allocation4], %s189
        %s191 = sand.u32 %s42, 1
        %s192 = smul.addr %s191, 128
        %s193 = scalar_lea.vmem [#allocation3], %s192
        %p194 = pneg %p55
        %p195 = pneg %p52
        %p196 = pneg %p81
        %p197 = pneg %p78
        %p198 = pneg %p107
        %p199 = pneg %p104
        %s200 = sand.u32 %s94, 1
        %s201 = scalar_lea.sflag [#allocation5], %s200
        %s202 = sand.u32 %s94, 1
        %s203 = smul.addr %s202, 384
        %s204 = scalar_lea.vmem [#allocation8], %s203
        %s205 = smul.u32 16, %s24
        %s206 = smul.u32 16, %s25
        %s207 = smul.u32 16, %s24
        %p208 = scmp.eq.s32.totalorder %s25, 0
        // Predicated region
        $region37: #{tpu_custom_call.1} parent=27 // pred_check
          %p209 = pneg %p208
        $region38: #{tpu_custom_call.1} parent=27 // pred_check_branch
          %211 = sbr.rel (%p209) target = $region40
        $region39: #{tpu_custom_call.1} parent=27 // pred_region
          %212 = vst [vmem:[#allocation2] sm:$0xff] 0.0
          %213 = vst [vmem:[#allocation2 + $0x8] sm:$0xff] 0.0
          %214 = vst [vmem:[#allocation2 + $0x10] sm:$0xff] 0.0
          %215 = vst [vmem:[#allocation2 + $0x18] sm:$0xff] 0.0
          %216 = vst [vmem:[#allocation2 + $0x20] sm:$0xff] 0.0
          %217 = vst [vmem:[#allocation2 + $0x28] sm:$0xff] 0.0
          %218 = vst [vmem:[#allocation2 + $0x30] sm:$0xff] 0.0
          %219 = vst [vmem:[#allocation2 + $0x38] sm:$0xff] 0.0
          %220 = vst [vmem:[#allocation2 + $0x40] sm:$0xff] 0.0
          %221 = vst [vmem:[#allocation2 + $0x48] sm:$0xff] 0.0
          %222 = vst [vmem:[#allocation2 + $0x50] sm:$0xff] 0.0
          %223 = vst [vmem:[#allocation2 + $0x58] sm:$0xff] 0.0
          %224 = vst [vmem:[#allocation2 + $0x60] sm:$0xff] 0.0
          %225 = vst [vmem:[#allocation2 + $0x68] sm:$0xff] 0.0
          %226 = vst [vmem:[#allocation2 + $0x70] sm:$0xff] 0.0
          %227 = vst [vmem:[#allocation2 + $0x78] sm:$0xff] 0.0
          %228 = vst [vmem:[#allocation2 + $0x80] sm:$0xff] 0.0
          %229 = vst [vmem:[#allocation2 + $0x88] sm:$0xff] 0.0
          %230 = vst [vmem:[#allocation2 + $0x90] sm:$0xff] 0.0
          %231 = vst [vmem:[#allocation2 + $0x98] sm:$0xff] 0.0
          %232 = vst [vmem:[#allocation2 + $0xa0] sm:$0xff] 0.0
          %233 = vst [vmem:[#allocation2 + $0xa8] sm:$0xff] 0.0
          %234 = vst [vmem:[#allocation2 + $0xb0] sm:$0xff] 0.0
          %235 = vst [vmem:[#allocation2 + $0xb8] sm:$0xff] 0.0
          %236 = vst [vmem:[#allocation2 + $0xc0] sm:$0xff] 0.0
          %237 = vst [vmem:[#allocation2 + $0xc8] sm:$0xff] 0.0
          %238 = vst [vmem:[#allocation2 + $0xd0] sm:$0xff] 0.0
          %239 = vst [vmem:[#allocation2 + $0xd8] sm:$0xff] 0.0
          %240 = vst [vmem:[#allocation2 + $0xe0] sm:$0xff] 0.0
          %241 = vst [vmem:[#allocation2 + $0xe8] sm:$0xff] 0.0
          %242 = vst [vmem:[#allocation2 + $0xf0] sm:$0xff] 0.0
          %243 = vst [vmem:[#allocation2 + $0xf8] sm:$0xff] 0.0
          %244 = vst [vmem:[#allocation2 + $0x100] sm:$0xff] 0.0
          %245 = vst [vmem:[#allocation2 + $0x108] sm:$0xff] 0.0
          %246 = vst [vmem:[#allocation2 + $0x110] sm:$0xff] 0.0
          %247 = vst [vmem:[#allocation2 + $0x118] sm:$0xff] 0.0
          %248 = vst [vmem:[#allocation2 + $0x120] sm:$0xff] 0.0
          %249 = vst [vmem:[#allocation2 + $0x128] sm:$0xff] 0.0
          %250 = vst [vmem:[#allocation2 + $0x130] sm:$0xff] 0.0
          %251 = vst [vmem:[#allocation2 + $0x138] sm:$0xff] 0.0
          %252 = vst [vmem:[#allocation2 + $0x140] sm:$0xff] 0.0
          %253 = vst [vmem:[#allocation2 + $0x148] sm:$0xff] 0.0
          %254 = vst [vmem:[#allocation2 + $0x150] sm:$0xff] 0.0
          %255 = vst [vmem:[#allocation2 + $0x158] sm:$0xff] 0.0
          %256 = vst [vmem:[#allocation2 + $0x160] sm:$0xff] 0.0
          %257 = vst [vmem:[#allocation2 + $0x168] sm:$0xff] 0.0
          %258 = vst [vmem:[#allocation2 + $0x170] sm:$0xff] 0.0
          %259 = vst [vmem:[#allocation2 + $0x178] sm:$0xff] 0.0
        $region40: #{tpu_custom_call.1} parent=27 // pred_fallthru
          _
        %v260 = vld [vmem:[#allocation2] sm:$0xff]
        %v261 = vld [vmem:[#allocation2 + $0x8] sm:$0xff]
        %v262 = vld [vmem:[#allocation2 + $0x10] sm:$0xff]
        %v263 = vld [vmem:[#allocation2 + $0x18] sm:$0xff]
        %v264 = vld [vmem:[#allocation2 + $0x20] sm:$0xff]
        %v265 = vld [vmem:[#allocation2 + $0x28] sm:$0xff]
        %v266 = vld [vmem:[#allocation2 + $0x30] sm:$0xff]
        %v267 = vld [vmem:[#allocation2 + $0x38] sm:$0xff]
        %v268 = vld [vmem:[#allocation2 + $0x40] sm:$0xff]
        %v269 = vld [vmem:[#allocation2 + $0x48] sm:$0xff]
        %v270 = vld [vmem:[#allocation2 + $0x50] sm:$0xff]
        %v271 = vld [vmem:[#allocation2 + $0x58] sm:$0xff]
        %v272 = vld [vmem:[#allocation2 + $0x60] sm:$0xff]
        %v273 = vld [vmem:[#allocation2 + $0x68] sm:$0xff]
        %v274 = vld [vmem:[#allocation2 + $0x70] sm:$0xff]
        %v275 = vld [vmem:[#allocation2 + $0x78] sm:$0xff]
        %v276 = vld [vmem:[#allocation2 + $0x80] sm:$0xff]
        %v277 = vld [vmem:[#allocation2 + $0x88] sm:$0xff]
        %v278 = vld [vmem:[#allocation2 + $0x90] sm:$0xff]
        %v279 = vld [vmem:[#allocation2 + $0x98] sm:$0xff]
        %v280 = vld [vmem:[#allocation2 + $0xa0] sm:$0xff]
        %v281 = vld [vmem:[#allocation2 + $0xa8] sm:$0xff]
        %v282 = vld [vmem:[#allocation2 + $0xb0] sm:$0xff]
        %v283 = vld [vmem:[#allocation2 + $0xb8] sm:$0xff]
        %v284 = vld [vmem:[#allocation2 + $0xc0] sm:$0xff]
        %v285 = vld [vmem:[#allocation2 + $0xc8] sm:$0xff]
        %v286 = vld [vmem:[#allocation2 + $0xd0] sm:$0xff]
        %v287 = vld [vmem:[#allocation2 + $0xd8] sm:$0xff]
        %v288 = vld [vmem:[#allocation2 + $0xe0] sm:$0xff]
        %v289 = vld [vmem:[#allocation2 + $0xe8] sm:$0xff]
        %v290 = vld [vmem:[#allocation2 + $0xf0] sm:$0xff]
        %v291 = vld [vmem:[#allocation2 + $0xf8] sm:$0xff]
        %v292 = vld [vmem:[#allocation2 + $0x100] sm:$0xff]
        %v293 = vld [vmem:[#allocation2 + $0x108] sm:$0xff]
        %v294 = vld [vmem:[#allocation2 + $0x110] sm:$0xff]
        %v295 = vld [vmem:[#allocation2 + $0x118] sm:$0xff]
        %v296 = vld [vmem:[#allocation2 + $0x120] sm:$0xff]
        %v297 = vld [vmem:[#allocation2 + $0x128] sm:$0xff]
        %v298 = vld [vmem:[#allocation2 + $0x130] sm:$0xff]
        %v299 = vld [vmem:[#allocation2 + $0x138] sm:$0xff]
        %v300 = vld [vmem:[#allocation2 + $0x140] sm:$0xff]
        %v301 = vld [vmem:[#allocation2 + $0x148] sm:$0xff]
        %v302 = vld [vmem:[#allocation2 + $0x150] sm:$0xff]
        %v303 = vld [vmem:[#allocation2 + $0x158] sm:$0xff]
        %v304 = vld [vmem:[#allocation2 + $0x160] sm:$0xff]
        %v305 = vld [vmem:[#allocation2 + $0x168] sm:$0xff]
        %v306 = vld [vmem:[#allocation2 + $0x170] sm:$0xff]
        %v307 = vld [vmem:[#allocation2 + $0x178] sm:$0xff]
        %v308 = vld [vmem:[%s178] sm:$0xff]
        %v309 = vld [vmem:[%s178 + $0x8] sm:$0xff]
        %v310 = vld [vmem:[%s178 + $0x10] sm:$0xff]
        %v311 = vld [vmem:[%s178 + $0x18] sm:$0xff]
        %v312 = vld [vmem:[%s178 + $0x20] sm:$0xff]
        %v313 = vld [vmem:[%s178 + $0x28] sm:$0xff]
        %v314 = vld [vmem:[%s178 + $0x30] sm:$0xff]
        %v315 = vld [vmem:[%s178 + $0x38] sm:$0xff]
        %v316 = vld [vmem:[%s178 + $0x40] sm:$0xff]
        %v317 = vld [vmem:[%s178 + $0x48] sm:$0xff]
        %v318 = vld [vmem:[%s178 + $0x50] sm:$0xff]
        %v319 = vld [vmem:[%s178 + $0x58] sm:$0xff]
        %v320 = vld [vmem:[%s178 + $0x60] sm:$0xff]
        %v321 = vld [vmem:[%s178 + $0x68] sm:$0xff]
        %v322 = vld [vmem:[%s178 + $0x70] sm:$0xff]
        %v323 = vld [vmem:[%s178 + $0x78] sm:$0xff]
        %v324 = vld [vmem:[#allocation6] sm:$0xff]
        %v325 = vld [vmem:[#allocation6 + $0x8] sm:$0xff]
        %v326 = vld [vmem:[#allocation6 + $0x10] sm:$0xff]
        %v327 = vld [vmem:[#allocation6 + $0x18] sm:$0xff]
        %v328 = vld [vmem:[#allocation6 + $0x20] sm:$0xff]
        %v329 = vld [vmem:[#allocation6 + $0x28] sm:$0xff]
        %v330 = vld [vmem:[#allocation6 + $0x30] sm:$0xff]
        %v331 = vld [vmem:[#allocation6 + $0x38] sm:$0xff]
        %v332 = vld [vmem:[#allocation6 + $0x40] sm:$0xff]
        %v333 = vld [vmem:[#allocation6 + $0x48] sm:$0xff]
        %v334 = vld [vmem:[#allocation6 + $0x50] sm:$0xff]
        %v335 = vld [vmem:[#allocation6 + $0x58] sm:$0xff]
        %v336 = vld [vmem:[#allocation6 + $0x60] sm:$0xff]
        %v337 = vld [vmem:[#allocation6 + $0x68] sm:$0xff]
        %v338 = vld [vmem:[#allocation6 + $0x70] sm:$0xff]
        %v339 = vld [vmem:[#allocation6 + $0x78] sm:$0xff]
        %v340 = vld [vmem:[#allocation6 + $0x80] sm:$0xff]
        %v341 = vld [vmem:[#allocation6 + $0x88] sm:$0xff]
        %v342 = vld [vmem:[#allocation6 + $0x90] sm:$0xff]
        %v343 = vld [vmem:[#allocation6 + $0x98] sm:$0xff]
        %v344 = vld [vmem:[#allocation6 + $0xa0] sm:$0xff]
        %v345 = vld [vmem:[#allocation6 + $0xa8] sm:$0xff]
        %v346 = vld [vmem:[#allocation6 + $0xb0] sm:$0xff]
        %v347 = vld [vmem:[#allocation6 + $0xb8] sm:$0xff]
        %v348 = vld [vmem:[#allocation6 + $0xc0] sm:$0xff]
        %v349 = vld [vmem:[#allocation6 + $0xc8] sm:$0xff]
        %v350 = vld [vmem:[#allocation6 + $0xd0] sm:$0xff]
        %v351 = vld [vmem:[#allocation6 + $0xd8] sm:$0xff]
        %v352 = vld [vmem:[#allocation6 + $0xe0] sm:$0xff]
        %v353 = vld [vmem:[#allocation6 + $0xe8] sm:$0xff]
        %v354 = vld [vmem:[#allocation6 + $0xf0] sm:$0xff]
        %v355 = vld [vmem:[#allocation6 + $0xf8] sm:$0xff]
        %v356 = vld [vmem:[#allocation6 + $0x100] sm:$0xff]
        %v357 = vld [vmem:[#allocation6 + $0x108] sm:$0xff]
        %v358 = vld [vmem:[#allocation6 + $0x110] sm:$0xff]
        %v359 = vld [vmem:[#allocation6 + $0x118] sm:$0xff]
        %v360 = vld [vmem:[#allocation6 + $0x120] sm:$0xff]
        %v361 = vld [vmem:[#allocation6 + $0x128] sm:$0xff]
        %v362 = vld [vmem:[#allocation6 + $0x130] sm:$0xff]
        %v363 = vld [vmem:[#allocation6 + $0x138] sm:$0xff]
        %v364 = vld [vmem:[#allocation6 + $0x140] sm:$0xff]
        %v365 = vld [vmem:[#allocation6 + $0x148] sm:$0xff]
        %v366 = vld [vmem:[#allocation6 + $0x150] sm:$0xff]
        %v367 = vld [vmem:[#allocation6 + $0x158] sm:$0xff]
        %v368 = vld [vmem:[#allocation6 + $0x160] sm:$0xff]
        %v369 = vld [vmem:[#allocation6 + $0x168] sm:$0xff]
        %v370 = vld [vmem:[#allocation6 + $0x170] sm:$0xff]
        %v371 = vld [vmem:[#allocation6 + $0x178] sm:$0xff]
        %372 = vmatpush.msra.mxu0 %v369
        %373 = vmatpush.msra.mxu0 %v366
        %374 = vmatpush.msra.mxu0 %v363
        %375 = vmatpush.msra.mxu0 %v360
        %376 = vmatpush.msra.mxu0 %v357
        %377 = vmatpush.msra.mxu0 %v354
        %378 = vmatpush.msra.mxu0 %v351
        %379 = vmatpush.msra.mxu0 %v348
        %380 = vmatpush.msra.mxu0 %v345
        %381 = vmatpush.msra.mxu0 %v342
        %382 = vmatpush.msra.mxu0 %v339
        %383 = vmatpush.msra.mxu0 %v336
        %384 = vmatpush.msra.mxu0 %v333
        %385 = vmatpush.msra.mxu0 %v330
        %386 = vmatpush.msra.mxu0 %v327
        %387 = vmatpush.msra.mxu0 %v324
        %388 = vmatmul.f32.gmra.mxu0 %v308
        %v389 = vpop.f32.mrf.mxu0
        %v390 = vadd.f32 0.0, %v389
        %391 = vmatmul.f32.gmra.mxu0 %v309
        %v392 = vpop.f32.mrf.mxu0
        %v393 = vadd.f32 0.0, %v392
        %394 = vmatmul.f32.gmra.mxu0 %v310
        %v395 = vpop.f32.mrf.mxu0
        %v396 = vadd.f32 0.0, %v395
        %397 = vmatmul.f32.gmra.mxu0 %v311
        %v398 = vpop.f32.mrf.mxu0
        %v399 = vadd.f32 0.0, %v398
        %400 = vmatmul.f32.gmra.mxu0 %v312
        %v401 = vpop.f32.mrf.mxu0
        %v402 = vadd.f32 0.0, %v401
        %403 = vmatmul.f32.gmra.mxu0 %v313
        %v404 = vpop.f32.mrf.mxu0
        %v405 = vadd.f32 0.0, %v404
        %406 = vmatmul.f32.gmra.mxu0 %v314
        %v407 = vpop.f32.mrf.mxu0
        %v408 = vadd.f32 0.0, %v407
        %409 = vmatmul.f32.gmra.mxu0 %v315
        %v410 = vpop.f32.mrf.mxu0
        %v411 = vadd.f32 0.0, %v410
        %412 = vmatmul.f32.gmra.mxu0 %v316
        %v413 = vpop.f32.mrf.mxu0
        %v414 = vadd.f32 0.0, %v413
        %415 = vmatmul.f32.gmra.mxu0 %v317
        %v416 = vpop.f32.mrf.mxu0
        %v417 = vadd.f32 0.0, %v416
        %418 = vmatmul.f32.gmra.mxu0 %v318
        %v419 = vpop.f32.mrf.mxu0
        %v420 = vadd.f32 0.0, %v419
        %421 = vmatmul.f32.gmra.mxu0 %v319
        %v422 = vpop.f32.mrf.mxu0
        %v423 = vadd.f32 0.0, %v422
        %424 = vmatmul.f32.gmra.mxu0 %v320
        %v425 = vpop.f32.mrf.mxu0
        %v426 = vadd.f32 0.0, %v425
        %427 = vmatmul.f32.gmra.mxu0 %v321
        %v428 = vpop.f32.mrf.mxu0
        %v429 = vadd.f32 0.0, %v428
        %430 = vmatmul.f32.gmra.mxu0 %v322
        %v431 = vpop.f32.mrf.mxu0
        %v432 = vadd.f32 0.0, %v431
        %433 = vmatmul.f32.gmra.mxu0 %v323
        %v434 = vpop.f32.mrf.mxu0
        %v435 = vadd.f32 0.0, %v434
        %436 = vdwg.mxu0
        %437 = vmatpush.msra.mxu0 %v370
        %438 = vmatpush.msra.mxu0 %v367
        %439 = vmatpush.msra.mxu0 %v364
        %440 = vmatpush.msra.mxu0 %v361
        %441 = vmatpush.msra.mxu0 %v358
        %442 = vmatpush.msra.mxu0 %v355
        %443 = vmatpush.msra.mxu0 %v352
        %444 = vmatpush.msra.mxu0 %v349
        %445 = vmatpush.msra.mxu0 %v346
        %446 = vmatpush.msra.mxu0 %v343
        %447 = vmatpush.msra.mxu0 %v340
        %448 = vmatpush.msra.mxu0 %v337
        %449 = vmatpush.msra.mxu0 %v334
        %450 = vmatpush.msra.mxu0 %v331
        %451 = vmatpush.msra.mxu0 %v328
        %452 = vmatpush.msra.mxu0 %v325
        %453 = vmatmul.f32.gmra.mxu0 %v308
        %v454 = vpop.f32.mrf.mxu0
        %v455 = vadd.f32 0.0, %v454
        %456 = vmatmul.f32.gmra.mxu0 %v309
        %v457 = vpop.f32.mrf.mxu0
        %v458 = vadd.f32 0.0, %v457
        %459 = vmatmul.f32.gmra.mxu0 %v310
        %v460 = vpop.f32.mrf.mxu0
        %v461 = vadd.f32 0.0, %v460
        %462 = vmatmul.f32.gmra.mxu0 %v311
        %v463 = vpop.f32.mrf.mxu0
        %v464 = vadd.f32 0.0, %v463
        %465 = vmatmul.f32.gmra.mxu0 %v312
        %v466 = vpop.f32.mrf.mxu0
        %v467 = vadd.f32 0.0, %v466
        %468 = vmatmul.f32.gmra.mxu0 %v313
        %v469 = vpop.f32.mrf.mxu0
        %v470 = vadd.f32 0.0, %v469
        %471 = vmatmul.f32.gmra.mxu0 %v314
        %v472 = vpop.f32.mrf.mxu0
        %v473 = vadd.f32 0.0, %v472
        %474 = vmatmul.f32.gmra.mxu0 %v315
        %v475 = vpop.f32.mrf.mxu0
        %v476 = vadd.f32 0.0, %v475
        %477 = vmatmul.f32.gmra.mxu0 %v316
        %v478 = vpop.f32.mrf.mxu0
        %v479 = vadd.f32 0.0, %v478
        %480 = vmatmul.f32.gmra.mxu0 %v317
        %v481 = vpop.f32.mrf.mxu0
        %v482 = vadd.f32 0.0, %v481
        %483 = vmatmul.f32.gmra.mxu0 %v318
        %v484 = vpop.f32.mrf.mxu0
        %v485 = vadd.f32 0.0, %v484
        %486 = vmatmul.f32.gmra.mxu0 %v319
        %v487 = vpop.f32.mrf.mxu0
        %v488 = vadd.f32 0.0, %v487
        %489 = vmatmul.f32.gmra.mxu0 %v320
        %v490 = vpop.f32.mrf.mxu0
        %v491 = vadd.f32 0.0, %v490
        %492 = vmatmul.f32.gmra.mxu0 %v321
        %v493 = vpop.f32.mrf.mxu0
        %v494 = vadd.f32 0.0, %v493
        %495 = vmatmul.f32.gmra.mxu0 %v322
        %v496 = vpop.f32.mrf.mxu0
        %v497 = vadd.f32 0.0, %v496
        %498 = vmatmul.f32.gmra.mxu0 %v323
        %v499 = vpop.f32.mrf.mxu0
        %v500 = vadd.f32 0.0, %v499
        %501 = vdwg.mxu0
        %502 = vmatpush.msra.mxu0 %v371
        %503 = vmatpush.msra.mxu0 %v368
        %504 = vmatpush.msra.mxu0 %v365
        %505 = vmatpush.msra.mxu0 %v362
        %506 = vmatpush.msra.mxu0 %v359
        %507 = vmatpush.msra.mxu0 %v356
        %508 = vmatpush.msra.mxu0 %v353
        %509 = vmatpush.msra.mxu0 %v350
        %510 = vmatpush.msra.mxu0 %v347
        %511 = vmatpush.msra.mxu0 %v344
        %512 = vmatpush.msra.mxu0 %v341
        %513 = vmatpush.msra.mxu0 %v338
        %514 = vmatpush.msra.mxu0 %v335
        %515 = vmatpush.msra.mxu0 %v332
        %516 = vmatpush.msra.mxu0 %v329
        %517 = vmatpush.msra.mxu0 %v326
        %518 = vmatmul.f32.gmra.mxu0 %v308
        %v519 = vpop.f32.mrf.mxu0
        %v520 = vadd.f32 0.0, %v519
        %521 = vmatmul.f32.gmra.mxu0 %v309
        %v522 = vpop.f32.mrf.mxu0
        %v523 = vadd.f32 0.0, %v522
        %524 = vmatmul.f32.gmra.mxu0 %v310
        %v525 = vpop.f32.mrf.mxu0
        %v526 = vadd.f32 0.0, %v525
        %527 = vmatmul.f32.gmra.mxu0 %v311
        %v528 = vpop.f32.mrf.mxu0
        %v529 = vadd.f32 0.0, %v528
        %530 = vmatmul.f32.gmra.mxu0 %v312
        %v531 = vpop.f32.mrf.mxu0
        %v532 = vadd.f32 0.0, %v531
        %533 = vmatmul.f32.gmra.mxu0 %v313
        %v534 = vpop.f32.mrf.mxu0
        %v535 = vadd.f32 0.0, %v534
        %536 = vmatmul.f32.gmra.mxu0 %v314
        %v537 = vpop.f32.mrf.mxu0
        %v538 = vadd.f32 0.0, %v537
        %539 = vmatmul.f32.gmra.mxu0 %v315
        %v540 = vpop.f32.mrf.mxu0
        %v541 = vadd.f32 0.0, %v540
        %542 = vmatmul.f32.gmra.mxu0 %v316
        %v543 = vpop.f32.mrf.mxu0
        %v544 = vadd.f32 0.0, %v543
        %545 = vmatmul.f32.gmra.mxu0 %v317
        %v546 = vpop.f32.mrf.mxu0
        %v547 = vadd.f32 0.0, %v546
        %548 = vmatmul.f32.gmra.mxu0 %v318
        %v549 = vpop.f32.mrf.mxu0
        %v550 = vadd.f32 0.0, %v549
        %551 = vmatmul.f32.gmra.mxu0 %v319
        %v552 = vpop.f32.mrf.mxu0
        %v553 = vadd.f32 0.0, %v552
        %554 = vmatmul.f32.gmra.mxu0 %v320
        %v555 = vpop.f32.mrf.mxu0
        %v556 = vadd.f32 0.0, %v555
        %557 = vmatmul.f32.gmra.mxu0 %v321
        %v558 = vpop.f32.mrf.mxu0
        %v559 = vadd.f32 0.0, %v558
        %560 = vmatmul.f32.gmra.mxu0 %v322
        %v561 = vpop.f32.mrf.mxu0
        %v562 = vadd.f32 0.0, %v561
        %563 = vmatmul.f32.gmra.mxu0 %v323
        %v564 = vpop.f32.mrf.mxu0
        %v565 = vadd.f32 0.0, %v564
        %566 = vdwg.mxu0
        %v567 = vadd.f32 %v260, %v390
        %v568 = vadd.f32 %v261, %v455
        %v569 = vadd.f32 %v262, %v520
        %v570 = vadd.f32 %v263, %v393
        %v571 = vadd.f32 %v264, %v458
        %v572 = vadd.f32 %v265, %v523
        %v573 = vadd.f32 %v266, %v396
        %v574 = vadd.f32 %v267, %v461
        %v575 = vadd.f32 %v268, %v526
        %v576 = vadd.f32 %v269, %v399
        %v577 = vadd.f32 %v270, %v464
        %v578 = vadd.f32 %v271, %v529
        %v579 = vadd.f32 %v272, %v402
        %v580 = vadd.f32 %v273, %v467
        %v581 = vadd.f32 %v274, %v532
        %v582 = vadd.f32 %v275, %v405
        %v583 = vadd.f32 %v276, %v470
        %v584 = vadd.f32 %v277, %v535
        %v585 = vadd.f32 %v278, %v408
        %v586 = vadd.f32 %v279, %v473
        %v587 = vadd.f32 %v280, %v538
        %v588 = vadd.f32 %v281, %v411
        %v589 = vadd.f32 %v282, %v476
        %v590 = vadd.f32 %v283, %v541
        %v591 = vadd.f32 %v284, %v414
        %v592 = vadd.f32 %v285, %v479
        %v593 = vadd.f32 %v286, %v544
        %v594 = vadd.f32 %v287, %v417
        %v595 = vadd.f32 %v288, %v482
        %v596 = vadd.f32 %v289, %v547
        %v597 = vadd.f32 %v290, %v420
        %v598 = vadd.f32 %v291, %v485
        %v599 = vadd.f32 %v292, %v550
        %v600 = vadd.f32 %v293, %v423
        %v601 = vadd.f32 %v294, %v488
        %v602 = vadd.f32 %v295, %v553
        %v603 = vadd.f32 %v296, %v426
        %v604 = vadd.f32 %v297, %v491
        %v605 = vadd.f32 %v298, %v556
        %v606 = vadd.f32 %v299, %v429
        %v607 = vadd.f32 %v300, %v494
        %v608 = vadd.f32 %v301, %v559
        %v609 = vadd.f32 %v302, %v432
        %v610 = vadd.f32 %v303, %v497
        %v611 = vadd.f32 %v304, %v562
        %v612 = vadd.f32 %v305, %v435
        %v613 = vadd.f32 %v306, %v500
        %v614 = vadd.f32 %v307, %v565
        %615 = vst [vmem:[#allocation2] sm:$0xff] %v567
        %616 = vst [vmem:[#allocation2 + $0x8] sm:$0xff] %v568
        %617 = vst [vmem:[#allocation2 + $0x10] sm:$0xff] %v569
        %618 = vst [vmem:[#allocation2 + $0x18] sm:$0xff] %v570
        %619 = vst [vmem:[#allocation2 + $0x20] sm:$0xff] %v571
        %620 = vst [vmem:[#allocation2 + $0x28] sm:$0xff] %v572
        %621 = vst [vmem:[#allocation2 + $0x30] sm:$0xff] %v573
        %622 = vst [vmem:[#allocation2 + $0x38] sm:$0xff] %v574
        %623 = vst [vmem:[#allocation2 + $0x40] sm:$0xff] %v575
        %624 = vst [vmem:[#allocation2 + $0x48] sm:$0xff] %v576
        %625 = vst [vmem:[#allocation2 + $0x50] sm:$0xff] %v577
        %626 = vst [vmem:[#allocation2 + $0x58] sm:$0xff] %v578
        %627 = vst [vmem:[#allocation2 + $0x60] sm:$0xff] %v579
        %628 = vst [vmem:[#allocation2 + $0x68] sm:$0xff] %v580
        %629 = vst [vmem:[#allocation2 + $0x70] sm:$0xff] %v581
        %630 = vst [vmem:[#allocation2 + $0x78] sm:$0xff] %v582
        %631 = vst [vmem:[#allocation2 + $0x80] sm:$0xff] %v583
        %632 = vst [vmem:[#allocation2 + $0x88] sm:$0xff] %v584
        %633 = vst [vmem:[#allocation2 + $0x90] sm:$0xff] %v585
        %634 = vst [vmem:[#allocation2 + $0x98] sm:$0xff] %v586
        %635 = vst [vmem:[#allocation2 + $0xa0] sm:$0xff] %v587
        %636 = vst [vmem:[#allocation2 + $0xa8] sm:$0xff] %v588
        %637 = vst [vmem:[#allocation2 + $0xb0] sm:$0xff] %v589
        %638 = vst [vmem:[#allocation2 + $0xb8] sm:$0xff] %v590
        %639 = vst [vmem:[#allocation2 + $0xc0] sm:$0xff] %v591
        %640 = vst [vmem:[#allocation2 + $0xc8] sm:$0xff] %v592
        %641 = vst [vmem:[#allocation2 + $0xd0] sm:$0xff] %v593
        %642 = vst [vmem:[#allocation2 + $0xd8] sm:$0xff] %v594
        %643 = vst [vmem:[#allocation2 + $0xe0] sm:$0xff] %v595
        %644 = vst [vmem:[#allocation2 + $0xe8] sm:$0xff] %v596
        %645 = vst [vmem:[#allocation2 + $0xf0] sm:$0xff] %v597
        %646 = vst [vmem:[#allocation2 + $0xf8] sm:$0xff] %v598
        %647 = vst [vmem:[#allocation2 + $0x100] sm:$0xff] %v599
        %648 = vst [vmem:[#allocation2 + $0x108] sm:$0xff] %v600
        %649 = vst [vmem:[#allocation2 + $0x110] sm:$0xff] %v601
        %650 = vst [vmem:[#allocation2 + $0x118] sm:$0xff] %v602
        %651 = vst [vmem:[#allocation2 + $0x120] sm:$0xff] %v603
        %652 = vst [vmem:[#allocation2 + $0x128] sm:$0xff] %v604
        %653 = vst [vmem:[#allocation2 + $0x130] sm:$0xff] %v605
        %654 = vst [vmem:[#allocation2 + $0x138] sm:$0xff] %v606
        %655 = vst [vmem:[#allocation2 + $0x140] sm:$0xff] %v607
        %656 = vst [vmem:[#allocation2 + $0x148] sm:$0xff] %v608
        %657 = vst [vmem:[#allocation2 + $0x150] sm:$0xff] %v609
        %658 = vst [vmem:[#allocation2 + $0x158] sm:$0xff] %v610
        %659 = vst [vmem:[#allocation2 + $0x160] sm:$0xff] %v611
        %660 = vst [vmem:[#allocation2 + $0x168] sm:$0xff] %v612
        %661 = vst [vmem:[#allocation2 + $0x170] sm:$0xff] %v613
        %662 = vst [vmem:[#allocation2 + $0x178] sm:$0xff] %v614
        // Predicated region
        $region41: #{tpu_custom_call.1} parent=27 // pred_check
          %p663 = pneg %p208
        $region42: #{tpu_custom_call.1} parent=27 // pred_check_branch
          %665 = sbr.rel (%p663) target = $region44
        $region43: #{tpu_custom_call.1} parent=27 // pred_region
          %v666 = vld [vmem:[#allocation2] sm:$0xff]
          %v667 = vld [vmem:[#allocation2 + $0x8] sm:$0xff]
          %v668 = vld [vmem:[#allocation2 + $0x10] sm:$0xff]
          %v669 = vld [vmem:[#allocation2 + $0x18] sm:$0xff]
          %v670 = vld [vmem:[#allocation2 + $0x20] sm:$0xff]
          %v671 = vld [vmem:[#allocation2 + $0x28] sm:$0xff]
          %v672 = vld [vmem:[#allocation2 + $0x30] sm:$0xff]
          %v673 = vld [vmem:[#allocation2 + $0x38] sm:$0xff]
          %v674 = vld [vmem:[#allocation2 + $0x40] sm:$0xff]
          %v675 = vld [vmem:[#allocation2 + $0x48] sm:$0xff]
          %v676 = vld [vmem:[#allocation2 + $0x50] sm:$0xff]
          %v677 = vld [vmem:[#allocation2 + $0x58] sm:$0xff]
          %v678 = vld [vmem:[#allocation2 + $0x60] sm:$0xff]
          %v679 = vld [vmem:[#allocation2 + $0x68] sm:$0xff]
          %v680 = vld [vmem:[#allocation2 + $0x70] sm:$0xff]
          %v681 = vld [vmem:[#allocation2 + $0x78] sm:$0xff]
          %v682 = vld [vmem:[#allocation2 + $0x80] sm:$0xff]
          %v683 = vld [vmem:[#allocation2 + $0x88] sm:$0xff]
          %v684 = vld [vmem:[#allocation2 + $0x90] sm:$0xff]
          %v685 = vld [vmem:[#allocation2 + $0x98] sm:$0xff]
          %v686 = vld [vmem:[#allocation2 + $0xa0] sm:$0xff]
          %v687 = vld [vmem:[#allocation2 + $0xa8] sm:$0xff]
          %v688 = vld [vmem:[#allocation2 + $0xb0] sm:$0xff]
          %v689 = vld [vmem:[#allocation2 + $0xb8] sm:$0xff]
          %v690 = vld [vmem:[#allocation2 + $0xc0] sm:$0xff]
          %v691 = vld [vmem:[#allocation2 + $0xc8] sm:$0xff]
          %v692 = vld [vmem:[#allocation2 + $0xd0] sm:$0xff]
          %v693 = vld [vmem:[#allocation2 + $0xd8] sm:$0xff]
          %v694 = vld [vmem:[#allocation2 + $0xe0] sm:$0xff]
          %v695 = vld [vmem:[#allocation2 + $0xe8] sm:$0xff]
          %v696 = vld [vmem:[#allocation2 + $0xf0] sm:$0xff]
          %v697 = vld [vmem:[#allocation2 + $0xf8] sm:$0xff]
          %v698 = vld [vmem:[#allocation2 + $0x100] sm:$0xff]
          %v699 = vld [vmem:[#allocation2 + $0x108] sm:$0xff]
          %v700 = vld [vmem:[#allocation2 + $0x110] sm:$0xff]
          %v701 = vld [vmem:[#allocation2 + $0x118] sm:$0xff]
          %v702 = vld [vmem:[#allocation2 + $0x120] sm:$0xff]
          %v703 = vld [vmem:[#allocation2 + $0x128] sm:$0xff]
          %v704 = vld [vmem:[#allocation2 + $0x130] sm:$0xff]
          %v705 = vld [vmem:[#allocation2 + $0x138] sm:$0xff]
          %v706 = vld [vmem:[#allocation2 + $0x140] sm:$0xff]
          %v707 = vld [vmem:[#allocation2 + $0x148] sm:$0xff]
          %v708 = vld [vmem:[#allocation2 + $0x150] sm:$0xff]
          %v709 = vld [vmem:[#allocation2 + $0x158] sm:$0xff]
          %v710 = vld [vmem:[#allocation2 + $0x160] sm:$0xff]
          %v711 = vld [vmem:[#allocation2 + $0x168] sm:$0xff]
          %v712 = vld [vmem:[#allocation2 + $0x170] sm:$0xff]
          %v713 = vld [vmem:[#allocation2 + $0x178] sm:$0xff]
          %714 = vst [vmem:[%s204] sm:$0xff] %v666
          %715 = vst [vmem:[%s204 + $0x8] sm:$0xff] %v667
          %716 = vst [vmem:[%s204 + $0x10] sm:$0xff] %v668
          %717 = vst [vmem:[%s204 + $0x18] sm:$0xff] %v669
          %718 = vst [vmem:[%s204 + $0x20] sm:$0xff] %v670
          %719 = vst [vmem:[%s204 + $0x28] sm:$0xff] %v671
          %720 = vst [vmem:[%s204 + $0x30] sm:$0xff] %v672
          %721 = vst [vmem:[%s204 + $0x38] sm:$0xff] %v673
          %722 = vst [vmem:[%s204 + $0x40] sm:$0xff] %v674
          %723 = vst [vmem:[%s204 + $0x48] sm:$0xff] %v675
          %724 = vst [vmem:[%s204 + $0x50] sm:$0xff] %v676
          %725 = vst [vmem:[%s204 + $0x58] sm:$0xff] %v677
          %726 = vst [vmem:[%s204 + $0x60] sm:$0xff] %v678
          %727 = vst [vmem:[%s204 + $0x68] sm:$0xff] %v679
          %728 = vst [vmem:[%s204 + $0x70] sm:$0xff] %v680
          %729 = vst [vmem:[%s204 + $0x78] sm:$0xff] %v681
          %730 = vst [vmem:[%s204 + $0x80] sm:$0xff] %v682
          %731 = vst [vmem:[%s204 + $0x88] sm:$0xff] %v683
          %732 = vst [vmem:[%s204 + $0x90] sm:$0xff] %v684
          %733 = vst [vmem:[%s204 + $0x98] sm:$0xff] %v685
          %734 = vst [vmem:[%s204 + $0xa0] sm:$0xff] %v686
          %735 = vst [vmem:[%s204 + $0xa8] sm:$0xff] %v687
          %736 = vst [vmem:[%s204 + $0xb0] sm:$0xff] %v688
          %737 = vst [vmem:[%s204 + $0xb8] sm:$0xff] %v689
          %738 = vst [vmem:[%s204 + $0xc0] sm:$0xff] %v690
          %739 = vst [vmem:[%s204 + $0xc8] sm:$0xff] %v691
          %740 = vst [vmem:[%s204 + $0xd0] sm:$0xff] %v692
          %741 = vst [vmem:[%s204 + $0xd8] sm:$0xff] %v693
          %742 = vst [vmem:[%s204 + $0xe0] sm:$0xff] %v694
          %743 = vst [vmem:[%s204 + $0xe8] sm:$0xff] %v695
          %744 = vst [vmem:[%s204 + $0xf0] sm:$0xff] %v696
          %745 = vst [vmem:[%s204 + $0xf8] sm:$0xff] %v697
          %746 = vst [vmem:[%s204 + $0x100] sm:$0xff] %v698
          %747 = vst [vmem:[%s204 + $0x108] sm:$0xff] %v699
          %748 = vst [vmem:[%s204 + $0x110] sm:$0xff] %v700
          %749 = vst [vmem:[%s204 + $0x118] sm:$0xff] %v701
          %750 = vst [vmem:[%s204 + $0x120] sm:$0xff] %v702
          %751 = vst [vmem:[%s204 + $0x128] sm:$0xff] %v703
          %752 = vst [vmem:[%s204 + $0x130] sm:$0xff] %v704
          %753 = vst [vmem:[%s204 + $0x138] sm:$0xff] %v705
          %754 = vst [vmem:[%s204 + $0x140] sm:$0xff] %v706
          %755 = vst [vmem:[%s204 + $0x148] sm:$0xff] %v707
          %756 = vst [vmem:[%s204 + $0x150] sm:$0xff] %v708
          %757 = vst [vmem:[%s204 + $0x158] sm:$0xff] %v709
          %758 = vst [vmem:[%s204 + $0x160] sm:$0xff] %v710
          %759 = vst [vmem:[%s204 + $0x168] sm:$0xff] %v711
          %760 = vst [vmem:[%s204 + $0x170] sm:$0xff] %v712
          %761 = vst [vmem:[%s204 + $0x178] sm:$0xff] %v713
        $region44: #{tpu_custom_call.1} parent=27 // pred_fallthru
          _
        %s762 = sand.u32 %s94, 1
        %s763 = scalar_lea.sflag [#allocation5], %s762
        %s764 = sand.u32 %s94, 1
        %s765 = smul.addr %s764, 384
        %s766 = scalar_lea.vmem [#allocation8], %s765
        // Predicated region
        $region45: #{tpu_custom_call.1} parent=27 // pred_check
          %p767 = pneg %p104
        $region46: #{tpu_custom_call.1} parent=27 // pred_check_branch
          %769 = sbr.rel (%p767) target = $region48
        $region47: #{tpu_custom_call.1} parent=27 // pred_region
          %s770 = smul.u32 16, %s24
          %772 = vsyncadd %s763, 0
          %s773 = smul.addr %s770, 3
          %s774 = smul.addr %s773, 8
          %s775 = scalar_lea.hbm %s2, %s774
          %s776 = sshll.u32 %s766, 4
          %s777 = int_to_ptr.vmem [resolvable:$true] %s776
          %s778 = sshll.u32 %s775, 4
          %s779 = int_to_ptr.hbm [resolvable:$true] %s778
          %784 = dma.vmem_to_hbm [thread:$0]  %s777, 6144, %s779, %s763, 384, 384, 24
        $region48: #{tpu_custom_call.1} parent=27 // pred_fallthru
          _
      $region28: #{tpu_custom_call.1} parent=5 // pred_fallthru
        _
      %p785 = scmp.le.s32.totalorder 2, %s15
      // Predicated region
      $region49: #{tpu_custom_call.1} parent=5 // pred_check
        %p786 = pneg %p785
      $region50: #{tpu_custom_call.1} parent=5 // pred_check_branch
        %788 = sbr.rel (%p786) target = $region52
      $region51: #{tpu_custom_call.1} parent=5 // pred_region
        %s789 = ssub.s32 %s15, 2
        // Predicated region
        $region53: #{tpu_custom_call.1} parent=51 // pred_check
          %p790 = pneg %p110
        $region54: #{tpu_custom_call.1} parent=51 // pred_check_branch
          %792 = sbr.rel (%p790) target = $region56
        $region55: #{tpu_custom_call.1} parent=51 // pred_region
          %s793 = sand.u32 %s95, 1
          %s794 = scalar_lea.sflag [#allocation5], %s793
          %s795 = sand.u32 %s95, 1
          %s796 = smul.addr %s795, 384
          %s797 = scalar_lea.vmem [#allocation8], %s796
          %799 = dma.done %s794, 6144
        $region56: #{tpu_custom_call.1} parent=51 // pred_fallthru
          _
      $region52: #{tpu_custom_call.1} parent=5 // pred_fallthru
        _
    $region6: #{tpu_custom_call.1} parent=1 // loop_footer
      %s19 = sadd.s32 1, %s15
    $region7: #{tpu_custom_call.1} parent=1 // loop_footer_branch
      %14 = sbr.rel target = $region3
    $region8: #{tpu_custom_call.1} parent=1 // loop_exit
      _
    %800 = vsyncpa [#allocation4], 1
    %s801 = scalar_lea.sflag [#allocation4], 1
    %802 = vsyncpa %s801, 1
    %803 = vsyncpa [#allocation7], 1
    %804 = vsyncpa [#allocation5], 1
    %s805 = scalar_lea.sflag [#allocation5], 1
    %806 = vsyncpa %s805, 1

</llo_original>
